<compile_context>
chip_gen: v6e
topology: v6e:2x2x1
jax: 0.10.0
libtpu: 0.0.40
codegen_flags: <defaults>
</compile_context>

<pallas_src>
import numpy as np
import jax
import jax.numpy as jnp
from jax import lax
from jax.experimental import pallas as pl
from jax.experimental.pallas import tpu as pltpu

# ---------------- configuration (small but consistent with the module) ----------------
B = 2                 # batch
N = 8                 # nodes per graph (= sequence length)
BN = B * N
N_NODES = 8           # embedding vocabulary size (n_nodes)
IN_NODE_NF = 4        # in_node_nf
HIDDEN = 32           # hidden_nf
HEADS = 2             # n_heads
HEAD_NF = 8           # head_nf
INNER = HEADS * HEAD_NF
F = IN_NODE_NF + 1    # node features after concatenating t
EPS = 1e-5            # nn.LayerNorm default eps
SCALE = HEAD_NF ** -0.5
LANES = 128
NEG = -1e9            # additive cross-graph mask value

# packed weight-buffer row offsets (matrix blocks 8-row aligned)
R_ENC = 0                          # rows  0.. 7: encoder (F rows used, HIDDEN lanes)
R_QKV = 8                          # rows  8..39: [q | k | v0 | v1 | q_hs | k_hs] (96 lanes)
R_WO = R_QKV + HIDDEN              # rows 40..55: output projection (INNER x HIDDEN)
R_DEC = R_WO + INNER               # rows 56..87: decoder (HIDDEN x 128, 3 lanes used)
R_VEC = R_DEC + HIDDEN             # rows 88..95: bias / vector rows
R_TAB = R_VEC + 8                  # rows 96..111: [cos | sin(signed) | cross-graph mask]
R_TOTAL = R_TAB + BN               # 112 rows total

# vector-row indices within the R_VEC block
V_BQKV, V_WE0, V_WE1, V_BEK, V_BO, V_WGA, V_WGB, V_MASK0 = range(8)

# activation-buffer lane offsets
A_FEAT = 0        # lanes 0:8   node features (F = 5 used, zero padded)
A_DIST = 8        # lanes 8:24  block-diagonal pairwise distances (BN x BN)

PREC = jax.lax.Precision.HIGHEST


def _mm(a, b):
    return jnp.dot(a, b, preferred_element_type=jnp.float32)


# ------------------------------------ kernel ------------------------------------------
def gt_dynamics_kernel(act_ref, w_ref, out_ref):
    act = act_ref[...]                                     # (BN, 128)
    feat = act[:, A_FEAT:A_FEAT + 8]                       # (BN, 8)  zero-padded features
    dbd = act[:, A_DIST:A_DIST + BN]                       # (BN, BN) block-diag distances

    # static slices of the packed, VMEM-resident weights
    wenc = w_ref[R_ENC:R_ENC + 8, 0:HIDDEN]                # (8, HIDDEN)
    wqkv = w_ref[R_QKV:R_QKV + HIDDEN, 0:6 * INNER]        # (HIDDEN, 96)
    wo = w_ref[R_WO:R_WO + INNER, 0:HIDDEN]                # (INNER, HIDDEN)
    wdec = w_ref[R_DEC:R_DEC + HIDDEN, :]                  # (HIDDEN, 128), cols>=3 zero

    vec = w_ref[R_VEC:R_VEC + 8, :]                        # (8, 128) bias / vector rows
    bqkv = vec[V_BQKV:V_BQKV + 1, 0:6 * INNER]
    we0 = vec[V_WE0:V_WE0 + 1, 0:INNER]                    # edges_to_kv weight, head-0 lanes
    we1 = vec[V_WE1:V_WE1 + 1, 0:INNER]                    # edges_to_kv weight, head-1 lanes
    bek = vec[V_BEK:V_BEK + 1, 0:INNER]                    # edges_to_kv bias (both heads)
    bo = vec[V_BO:V_BO + 1, 0:HIDDEN]
    wg_a = vec[V_WGA:V_WGA + 1, 0:HIDDEN]                  # (wg1+wg3)^T
    wg_b = vec[V_WGB:V_WGB + 1, 0:HIDDEN]                  # (wg2-wg3)^T
    mask0 = vec[V_MASK0:V_MASK0 + 1, 0:INNER]              # 1.0 on head-0 lanes

    tab = w_ref[R_TAB:R_TAB + BN, 0:3 * INNER]             # (BN, 48)
    cosr = tab[:, 0:INNER]                                 # rotary cos (tiled over batch)
    sinr = tab[:, INNER:2 * INNER]                         # rotary sin, rotate-half sign folded
    cgm = tab[:, 2 * INNER:3 * INNER]                      # cross-graph additive mask (0 / NEG)

    # ---- node encoder + LayerNorm (affine folded into wqkv/bqkv host-side) ----
    x0 = _mm(feat, wenc)                                   # (BN, HIDDEN); residual input
    mu = jnp.mean(x0, axis=1, keepdims=True)
    var = jnp.mean((x0 - mu) ** 2, axis=1, keepdims=True)
    z = (x0 - mu) * lax.rsqrt(var + EPS)

    # ---- fused projection: q (pre-scaled), k, head-masked v0/v1, and pre-half-swapped
    #      q_hs/k_hs copies -> rotary needs no in-kernel lane shuffle ----
    qkv = _mm(z, wqkv) + bqkv                              # (BN, 96)
    q_c = qkv[:, 0:INNER]
    k_c = qkv[:, INNER:2 * INNER]
    v0 = qkv[:, 2 * INNER:3 * INNER]                       # v, zeros on head-1 lanes
    v1 = qkv[:, 3 * INNER:4 * INNER]                       # v, zeros on head-0 lanes
    q_h = qkv[:, 4 * INNER:5 * INNER]                      # half-swapped q projection
    k_h = qkv[:, 5 * INNER:6 * INNER]                      # half-swapped k projection

    q = q_c * cosr + q_h * sinr                            # rotary (2 muls + 1 add each)
    k = k_c * cosr + k_h * sinr

    qm0 = q * mask0                                        # head-0 query lanes
    qm1 = q - qm0                                          # head-1 query lanes

    # ---- attention, batched over both graphs via block-diag distances + additive mask ----
    def head(qm, we_row, v_h):
        # sim[i,j] = scale * q_i . (k_j + dist[i,j]*we)   (constant be term dropped:
        # softmax is shift-invariant along j; the be term in the value path remains)
        qk = lax.dot_general(qm, k, (((1,), (1,)), ((), ())),
                             preferred_element_type=jnp.float32)       # (BN, BN)
        qa = jnp.sum(q * we_row, axis=1, keepdims=True)                # (BN, 1)
        sim = qk + dbd * qa + cgm
        m = jnp.max(sim, axis=1, keepdims=True)
        p = jnp.exp(sim - m)
        s = jnp.sum(p, axis=1, keepdims=True)
        w = jnp.sum(p * dbd, axis=1, keepdims=True)                    # (BN, 1)
        o = _mm(p, v_h) + w * we_row                                   # un-normalized
        return o * pl.reciprocal(s, approx=False)                      # normalize once

    # per-head outputs live on disjoint lanes -> combine with a single add
    heads = head(qm0, we0, v0) + head(qm1, we1, v1) + bek              # (BN, INNER)

    attn_out = _mm(heads, wo) + bo                                     # (BN, HIDDEN)

    # ---- gated residual: gate computed on VPU/XLU (no MXU) ----
    gl = jnp.sum(attn_out * wg_a + x0 * wg_b, axis=1, keepdims=True)   # (BN, 1)
    gate = jax.nn.sigmoid(gl)
    nodes = x0 + (attn_out - x0) * gate

    # ---- decoder; wdec padded to 128 lanes -> single lane-dense store ----
    out_ref[...] = _mm(nodes, wdec)                                    # (BN, 128)


# ------------------------------- weight packing (run ONCE) -----------------------------
def pack_weights(p):
    d = HEAD_NF
    # fused lane order over INNER: [h0 evens, h1 evens, h0 odds, h1 odds]; with this
    # order interleaved rotate_half == half-swap of the 16 lanes (sign folded into sin).
    src = np.concatenate([np.arange(0, d, 2), d + np.arange(0, d, 2),
                          np.arange(1, d, 2), d + np.arange(1, d, 2)])
    mask0 = jnp.asarray((src // d) == 0, dtype=jnp.float32)[None, :]   # head-0 lanes
    mask1 = 1.0 - mask0

    def fuse_cols(w):                       # (HEADS, X, d) -> (X, INNER) in fused order
        cat = jnp.concatenate([w[h] for h in range(HEADS)], axis=-1)
        return cat[:, src]

    def hswap(a):                           # half-swap of the INNER columns
        return jnp.concatenate([a[:, INNER // 2:], a[:, :INNER // 2]], axis=-1)

    wq = fuse_cols(p["wq"]) * SCALE         # attention scale folded into q projection
    bq = fuse_cols(p["bq"]) * SCALE
    wk = fuse_cols(p["wk"])
    bk = fuse_cols(p["bk"])
    wv = fuse_cols(p["wv"])
    bv = fuse_cols(p["bv"])
    wek = fuse_cols(p["wek"])               # (1, INNER)
    bek = fuse_cols(p["bek"])               # (1, INNER)

    wqkv = jnp.concatenate([wq, wk, wv * mask0, wv * mask1, hswap(wq), hswap(wk)], axis=1)
    bqkv = jnp.concatenate([bq, bk, bv * mask0, bv * mask1, hswap(bq), hswap(bk)], axis=1)
    # fold the PreNorm LayerNorm affine (gamma, beta) into the projection
    bqkv = jnp.einsum("ij,jk->ik", p["beta"], wqkv, precision=PREC) + bqkv
    wqkv = wqkv * p["gamma"][0][:, None]

    wo = jnp.concatenate([p["wo"][h] for h in range(HEADS)], axis=0)[src, :]   # (INNER, HIDDEN)

    # rotary tables (tiled over batch), rotate-half sign folded into sin
    cos_f = jnp.concatenate([p["cos"]] * HEADS, axis=1)[:, src]                # (N, INNER)
    sin_f = jnp.concatenate([p["sin"]] * HEADS, axis=1)[:, src]
    sign = jnp.concatenate([-jnp.ones(INNER // 2, jnp.float32),
                            jnp.ones(INNER // 2, jnp.float32)])
    cos_full = jnp.tile(cos_f, (B, 1))                                         # (BN, INNER)
    sin_full = jnp.tile(sin_f * sign, (B, 1))

    # cross-graph additive mask (zeros on the diagonal blocks, NEG elsewhere)
    blk = jnp.kron(jnp.eye(B, dtype=jnp.float32), jnp.ones((N, N), jnp.float32))
    cgm = NEG * (1.0 - blk)                                                    # (BN, BN)

    wg_a = (p["wg1"] + p["wg3"]).T                                             # (1, HIDDEN)
    wg_b = (p["wg2"] - p["wg3"]).T

    w = jnp.zeros((R_TOTAL, LANES), jnp.float32)
    w = w.at[R_ENC:R_ENC + F, :HIDDEN].set(p["wenc"])
    w = w.at[R_QKV:R_QKV + HIDDEN, :6 * INNER].set(wqkv)
    w = w.at[R_WO:R_WO + INNER, :HIDDEN].set(wo)
    w = w.at[R_DEC:R_DEC + HIDDEN, :3].set(p["wdec"])
    w = w.at[R_VEC + V_BQKV, :6 * INNER].set(bqkv[0])
    w = w.at[R_VEC + V_WE0, :INNER].set((wek * mask0)[0])
    w = w.at[R_VEC + V_WE1, :INNER].set((wek * mask1)[0])
    w = w.at[R_VEC + V_BEK, :INNER].set(bek[0])
    w = w.at[R_VEC + V_BO, :HIDDEN].set(p["bo"][0])
    w = w.at[R_VEC + V_WGA, :HIDDEN].set(wg_a[0])
    w = w.at[R_VEC + V_WGB, :HIDDEN].set(wg_b[0])
    w = w.at[R_VEC + V_MASK0, :INNER].set(mask0[0])
    w = w.at[R_TAB:R_TAB + BN, 0:INNER].set(cos_full)
    w = w.at[R_TAB:R_TAB + BN, INNER:2 * INNER].set(sin_full)
    w = w.at[R_TAB:R_TAB + BN, 2 * INNER:3 * INNER].set(cgm)
    return w


# ------------------------------------ wrapper ------------------------------------------
@jax.jit
def gt_dynamics_forward(x_idx, pos, t, emb, w_packed):
    # JAX glue: embedding gather, time broadcast/concat, pairwise distances,
    # activation packing.  Weight packing is NOT done here (hoisted to main).
    # TODO(synk): the nn.Embedding lookup is a data-dependent row gather; it is done in
    #             JAX glue instead of inside the kernel (would need a DMA gather).
    feat = jnp.concatenate(
        [jnp.take(emb, x_idx[..., 0], axis=0),
         jnp.broadcast_to(t[:, :, None], (B, N, 1)).astype(jnp.float32)],
        axis=-1).astype(jnp.float32).reshape(BN, F)

    # torch.cdist(pos, pos), p=2, packed block-diagonally (cross-graph entries are
    # masked additively inside the kernel).
    pos = pos.astype(jnp.float32)
    diff = pos[:, :, None, :] - pos[:, None, :, :]
    dist = jnp.sqrt(jnp.sum(diff * diff, axis=-1))                     # (B, N, N)
    dbd = jax.scipy.linalg.block_diag(*[dist[b] for b in range(B)])    # (BN, BN)

    act = jnp.zeros((BN, LANES), jnp.float32)
    act = act.at[:, A_FEAT:A_FEAT + F].set(feat)
    act = act.at[:, A_DIST:A_DIST + BN].set(dbd)

    out = pl.pallas_call(
        gt_dynamics_kernel,
        out_shape=jax.ShapeDtypeStruct((BN, LANES), jnp.float32),
        grid=(1,),                                                     # single fused step
        in_specs=[pl.BlockSpec((BN, LANES), lambda i: (0, 0)),
                  pl.BlockSpec((R_TOTAL, LANES), lambda i: (0, 0))],
        out_specs=pl.BlockSpec((BN, LANES), lambda i: (0, 0)),
        compiler_params=pltpu.CompilerParams(dimension_semantics=("arbitrary",)),
    )(act, w_packed)
    return out[:, :3].reshape(B, N, 3)


# ------------------------------- parameter construction --------------------------------
def init_params(key):
    ks = jax.random.split(key, 16)

    def rn(k, shape, scale=0.2):
        return jax.random.normal(k, shape, jnp.float32) * scale

    d = HEAD_NF
    p = {}
    p["emb"] = rn(ks[0], (N_NODES, IN_NODE_NF), 1.0)       # nn.Embedding weight
    p["wenc"] = rn(ks[1], (F, HIDDEN))                     # node_encoder, no bias
    p["gamma"] = 1.0 + rn(ks[2], (1, HIDDEN), 0.1)         # PreNorm LayerNorm affine
    p["beta"] = rn(ks[3], (1, HIDDEN), 0.1)
    p["wq"] = rn(ks[4], (HEADS, HIDDEN, d))                # to_q split per head
    p["bq"] = rn(ks[5], (HEADS, 1, d), 0.1)
    p["wk"] = rn(ks[6], (HEADS, HIDDEN, d))                # to_kv (k half) per head
    p["bk"] = rn(ks[7], (HEADS, 1, d), 0.1)
    p["wv"] = rn(ks[8], (HEADS, HIDDEN, d))                # to_kv (v half) per head
    p["bv"] = rn(ks[9], (HEADS, 1, d), 0.1)
    p["wek"] = rn(ks[10], (HEADS, 1, d))                   # edges_to_kv (edge_dim = 1)
    p["bek"] = rn(ks[11], (HEADS, 1, d), 0.1)
    p["wo"] = rn(ks[12], (HEADS, d, HIDDEN))               # to_out per head
    p["bo"] = rn(ks[13], (1, HIDDEN), 0.1)
    wg = rn(ks[14], (3 * HIDDEN, 1))                       # GatedResidual proj (no bias)
    p["wg1"], p["wg2"], p["wg3"] = wg[:HIDDEN], wg[HIDDEN:2 * HIDDEN], wg[2 * HIDDEN:]
    p["wdec"] = rn(ks[15], (HIDDEN, 3))                    # decoder, no bias

    # rotary tables (RotaryEmbedding(head_nf), theta=10000, interleaved duplication)
    inv_freq = 1.0 / (10000.0 ** (jnp.arange(0, d, 2, dtype=jnp.float32) / d))
    freqs = jnp.arange(N, dtype=jnp.float32)[:, None] * inv_freq[None, :]
    freqs = jnp.repeat(freqs, 2, axis=-1)                  # (N, d), [f0,f0,f1,f1,...]
    p["cos"] = jnp.cos(freqs)
    p["sin"] = jnp.sin(freqs)
    return p


# --------------------------------- pure-JAX reference ----------------------------------
def reference_forward(x_idx, pos, t, p):
    def em(eq, *ops):
        return jnp.einsum(eq, *ops, precision=PREC)

    emb = jnp.take(p["emb"], x_idx[..., 0], axis=0)
    t_exp = jnp.broadcast_to(t[:, :, None], (B, N, 1)).astype(jnp.float32)
    feat = jnp.concatenate([emb, t_exp], axis=-1)
    diff = pos[:, :, None, :] - pos[:, None, :, :]
    dist = jnp.sqrt(jnp.sum(diff * diff, axis=-1))             # (B,N,N)
    e = dist[..., None]                                        # (B,N,N,1)

    x0 = em("bnf,fh->bnh", feat, p["wenc"])
    mu = jnp.mean(x0, axis=-1, keepdims=True)
    var = jnp.mean((x0 - mu) ** 2, axis=-1, keepdims=True)
    xn = (x0 - mu) / jnp.sqrt(var + EPS) * p["gamma"][0] + p["beta"][0]

    def rotate_half(x):
        x1 = x[..., 0::2]
        x2 = x[..., 1::2]
        return jnp.stack([-x2, x1], axis=-1).reshape(x.shape)

    cos, sin = p["cos"], p["sin"]
    attn_out = jnp.zeros((B, N, HIDDEN), jnp.float32)
    for h in range(HEADS):
        qh = em("bnh,hd->bnd", xn, p["wq"][h]) + p["bq"][h]
        kh = em("bnh,hd->bnd", xn, p["wk"][h]) + p["bk"][h]
        vh = em("bnh,hd->bnd", xn, p["wv"][h]) + p["bv"][h]
        qh = qh * cos + rotate_half(qh) * sin
        kh = kh * cos + rotate_half(kh) * sin
        ekv = e * p["wek"][h][0] + p["bek"][h][0]              # (B,N,N,d)
        kf = kh[:, None, :, :] + ekv
        vf = vh[:, None, :, :] + ekv
        sim = em("bid,bijd->bij", qh, kf) * SCALE
        attn = jax.nn.softmax(sim, axis=-1)
        oh = em("bij,bijd->bid", attn, vf)
        attn_out = attn_out + em("bnd,dh->bnh", oh, p["wo"][h])
    attn_out = attn_out + p["bo"][0]
    gl = (em("bnh,hk->bnk", attn_out, p["wg1"])
          + em("bnh,hk->bnk", x0, p["wg2"])
          + em("bnh,hk->bnk", attn_out - x0, p["wg3"]))
    gate = jax.nn.sigmoid(gl)
    nodes = attn_out * gate + x0 * (1.0 - gate)
    return em("bnh,hk->bnk", nodes, p["wdec"])


# ---------------------------------------- main ------------------------------------------
if __name__ == "__main__":
    key = jax.random.PRNGKey(0)
    kp, kx, kpos, kt = jax.random.split(key, 4)
    params = init_params(kp)

    x_idx = jax.random.randint(kx, (B, N, 1), 0, N_NODES, dtype=jnp.int32)   # node ids
    pos = jax.random.normal(kpos, (B, N, 3), jnp.float32)                    # positions
    t = jax.random.uniform(kt, (B, 1), dtype=jnp.float32)                    # diffusion time

    # weight packing depends only on params -> done once, outside the step path
    w_packed = jax.block_until_ready(pack_weights(params))

    out = gt_dynamics_forward(x_idx, pos, t, params["emb"], w_packed)
    out = jax.block_until_ready(out)

    ref = reference_forward(x_idx, pos, t, params)
    err = float(jnp.max(jnp.abs(out - ref)))
    assert out.shape == (B, N, 3), out.shape
    assert err < 1e-4, f"kernel/reference mismatch, max abs err = {err}"
    print("KERNEL_OK")
</pallas_src>

<mosaic_0001>
module attributes {stable_mosaic.version = 11 : i64} {
  func.func @gt_dynamics_kernel(%arg0: i32, %arg1: memref<16x128xf32, #tpu.memory_space<vmem>>, %arg2: memref<112x128xf32, #tpu.memory_space<vmem>>, %arg3: memref<16x128xf32, #tpu.memory_space<vmem>>) attributes {dimension_semantics = [#tpu.dimension_semantics<arbitrary>], iteration_bounds = array<i64: 1>, scalar_prefetch = 0 : i64, scratch_operands = 0 : i64, tpu.core_type = #tpu.core_type<tc>, window_params = [{pipeline_mode = #tpu.pipeline_mode<synchronous>, transform_indices = @transform_0, window_bounds = array<i64: 16, 128>}, {pipeline_mode = #tpu.pipeline_mode<synchronous>, transform_indices = @transform_1, window_bounds = array<i64: 112, 128>}, {pipeline_mode = #tpu.pipeline_mode<synchronous>, transform_indices = @transform_2, window_bounds = array<i64: 16, 128>}]} {
    %c0 = arith.constant 0 : index
    %c0_0 = arith.constant 0 : index
    %0 = vector.load %arg1[%c0, %c0_0] : memref<16x128xf32, #tpu.memory_space<vmem>>, vector<16x128xf32>
    %1 = vector.extract_strided_slice %0 {offsets = [0, 0], sizes = [16, 8], strides = [1, 1]} : vector<16x128xf32> to vector<16x8xf32>
    %2 = vector.extract_strided_slice %0 {offsets = [0, 8], sizes = [16, 16], strides = [1, 1]} : vector<16x128xf32> to vector<16x16xf32>
    %c0_1 = arith.constant 0 : index
    %c0_2 = arith.constant 0 : index
    %3 = vector.load %arg2[%c0_1, %c0_2] : memref<112x128xf32, #tpu.memory_space<vmem>>, vector<8x32xf32>
    %c8 = arith.constant 8 : index
    %c0_3 = arith.constant 0 : index
    %4 = vector.load %arg2[%c8, %c0_3] : memref<112x128xf32, #tpu.memory_space<vmem>>, vector<32x96xf32>
    %c40 = arith.constant 40 : index
    %c0_4 = arith.constant 0 : index
    %5 = vector.load %arg2[%c40, %c0_4] : memref<112x128xf32, #tpu.memory_space<vmem>>, vector<16x32xf32>
    %c56 = arith.constant 56 : index
    %c0_5 = arith.constant 0 : index
    %6 = vector.load %arg2[%c56, %c0_5] : memref<112x128xf32, #tpu.memory_space<vmem>>, vector<32x128xf32>
    %c88 = arith.constant 88 : index
    %c0_6 = arith.constant 0 : index
    %7 = vector.load %arg2[%c88, %c0_6] : memref<112x128xf32, #tpu.memory_space<vmem>>, vector<8x128xf32>
    %8 = vector.extract_strided_slice %7 {offsets = [0, 0], sizes = [1, 96], strides = [1, 1]} : vector<8x128xf32> to vector<1x96xf32>
    %9 = vector.extract_strided_slice %7 {offsets = [1, 0], sizes = [1, 16], strides = [1, 1]} : vector<8x128xf32> to vector<1x16xf32>
    %10 = vector.extract_strided_slice %7 {offsets = [2, 0], sizes = [1, 16], strides = [1, 1]} : vector<8x128xf32> to vector<1x16xf32>
    %11 = vector.extract_strided_slice %7 {offsets = [3, 0], sizes = [1, 16], strides = [1, 1]} : vector<8x128xf32> to vector<1x16xf32>
    %12 = vector.extract_strided_slice %7 {offsets = [4, 0], sizes = [1, 32], strides = [1, 1]} : vector<8x128xf32> to vector<1x32xf32>
    %13 = vector.extract_strided_slice %7 {offsets = [5, 0], sizes = [1, 32], strides = [1, 1]} : vector<8x128xf32> to vector<1x32xf32>
    %14 = vector.extract_strided_slice %7 {offsets = [6, 0], sizes = [1, 32], strides = [1, 1]} : vector<8x128xf32> to vector<1x32xf32>
    %15 = vector.extract_strided_slice %7 {offsets = [7, 0], sizes = [1, 16], strides = [1, 1]} : vector<8x128xf32> to vector<1x16xf32>
    %c96 = arith.constant 96 : index
    %c0_7 = arith.constant 0 : index
    %16 = vector.load %arg2[%c96, %c0_7] : memref<112x128xf32, #tpu.memory_space<vmem>>, vector<16x48xf32>
    %17 = vector.extract_strided_slice %16 {offsets = [0, 0], sizes = [16, 16], strides = [1, 1]} : vector<16x48xf32> to vector<16x16xf32>
    %18 = vector.extract_strided_slice %16 {offsets = [0, 16], sizes = [16, 16], strides = [1, 1]} : vector<16x48xf32> to vector<16x16xf32>
    %19 = vector.extract_strided_slice %16 {offsets = [0, 32], sizes = [16, 16], strides = [1, 1]} : vector<16x48xf32> to vector<16x16xf32>
    %cst = arith.constant dense<0.000000e+00> : vector<16x32xf32>
    %20 = tpu.matmul %1, %3, %cst {dimension_numbers = #tpu.dot_dimension_numbers<[1], [0], [0], [1], [0, 0, 1, 1], [], []>} : vector<16x8xf32>, vector<8x32xf32>, vector<16x32xf32> -> vector<16x32xf32>
    %cst_8 = arith.constant dense<0.000000e+00> : vector<16xf32>
    %21 = vector.multi_reduction <add>, %20, %cst_8 [1] : vector<16x32xf32> to vector<16xf32>
    %22 = vector.shape_cast %21 : vector<16xf32> to vector<16x1xf32>
    %cst_9 = arith.constant 3.200000e+01 : f32
    %23 = vector.broadcast %cst_9 : f32 to vector<16x1xf32>
    %24 = arith.divf %22, %23 : vector<16x1xf32>
    %25 = vector.broadcast %24 : vector<16x1xf32> to vector<16x32xf32>
    %26 = arith.subf %20, %25 : vector<16x32xf32>
    %27 = arith.mulf %26, %26 : vector<16x32xf32>
    %cst_10 = arith.constant dense<0.000000e+00> : vector<16xf32>
    %28 = vector.multi_reduction <add>, %27, %cst_10 [1] : vector<16x32xf32> to vector<16xf32>
    %29 = vector.shape_cast %28 : vector<16xf32> to vector<16x1xf32>
    %cst_11 = arith.constant 3.200000e+01 : f32
    %30 = vector.broadcast %cst_11 : f32 to vector<16x1xf32>
    %31 = arith.divf %29, %30 : vector<16x1xf32>
    %32 = vector.broadcast %24 : vector<16x1xf32> to vector<16x32xf32>
    %33 = arith.subf %20, %32 : vector<16x32xf32>
    %cst_12 = arith.constant 9.99999974E-6 : f32
    %34 = vector.broadcast %cst_12 : f32 to vector<16x1xf32>
    %35 = arith.addf %31, %34 : vector<16x1xf32>
    %36 = math.rsqrt %35 : vector<16x1xf32>
    %37 = vector.broadcast %36 : vector<16x1xf32> to vector<16x32xf32>
    %38 = arith.mulf %33, %37 : vector<16x32xf32>
    %cst_13 = arith.constant dense<0.000000e+00> : vector<16x96xf32>
    %39 = tpu.matmul %38, %4, %cst_13 {dimension_numbers = #tpu.dot_dimension_numbers<[1], [0], [0], [1], [0, 0, 1, 1], [], []>} : vector<16x32xf32>, vector<32x96xf32>, vector<16x96xf32> -> vector<16x96xf32>
    %40 = vector.broadcast %8 : vector<1x96xf32> to vector<16x96xf32>
    %41 = arith.addf %39, %40 : vector<16x96xf32>
    %42 = vector.extract_strided_slice %41 {offsets = [0, 0], sizes = [16, 16], strides = [1, 1]} : vector<16x96xf32> to vector<16x16xf32>
    %43 = vector.extract_strided_slice %41 {offsets = [0, 16], sizes = [16, 16], strides = [1, 1]} : vector<16x96xf32> to vector<16x16xf32>
    %44 = vector.extract_strided_slice %41 {offsets = [0, 32], sizes = [16, 16], strides = [1, 1]} : vector<16x96xf32> to vector<16x16xf32>
    %45 = vector.extract_strided_slice %41 {offsets = [0, 48], sizes = [16, 16], strides = [1, 1]} : vector<16x96xf32> to vector<16x16xf32>
    %46 = vector.extract_strided_slice %41 {offsets = [0, 64], sizes = [16, 16], strides = [1, 1]} : vector<16x96xf32> to vector<16x16xf32>
    %47 = vector.extract_strided_slice %41 {offsets = [0, 80], sizes = [16, 16], strides = [1, 1]} : vector<16x96xf32> to vector<16x16xf32>
    %48 = arith.mulf %42, %17 : vector<16x16xf32>
    %49 = arith.mulf %46, %18 : vector<16x16xf32>
    %50 = arith.addf %48, %49 : vector<16x16xf32>
    %51 = arith.mulf %43, %17 : vector<16x16xf32>
    %52 = arith.mulf %47, %18 : vector<16x16xf32>
    %53 = arith.addf %51, %52 : vector<16x16xf32>
    %54 = vector.broadcast %15 : vector<1x16xf32> to vector<16x16xf32>
    %55 = arith.mulf %50, %54 : vector<16x16xf32>
    %56 = arith.subf %50, %55 : vector<16x16xf32>
    %cst_14 = arith.constant dense<0.000000e+00> : vector<16x16xf32>
    %57 = tpu.matmul %55, %53, %cst_14 {dimension_numbers = #tpu.dot_dimension_numbers<[1], [1], [0], [0], [0, 0, 1, 0], [], []>} : vector<16x16xf32>, vector<16x16xf32>, vector<16x16xf32> -> vector<16x16xf32>
    %58 = vector.broadcast %9 : vector<1x16xf32> to vector<16x16xf32>
    %59 = arith.mulf %50, %58 : vector<16x16xf32>
    %cst_15 = arith.constant dense<0.000000e+00> : vector<16xf32>
    %60 = vector.multi_reduction <add>, %59, %cst_15 [1] : vector<16x16xf32> to vector<16xf32>
    %61 = vector.shape_cast %60 : vector<16xf32> to vector<16x1xf32>
    %62 = vector.broadcast %61 : vector<16x1xf32> to vector<16x16xf32>
    %63 = arith.mulf %2, %62 : vector<16x16xf32>
    %64 = arith.addf %57, %63 : vector<16x16xf32>
    %65 = arith.addf %64, %19 : vector<16x16xf32>
    %cst_16 = arith.constant dense<0xFF800000> : vector<16xf32>
    %66 = vector.multi_reduction <maximumf>, %65, %cst_16 [1] : vector<16x16xf32> to vector<16xf32>
    %67 = vector.shape_cast %66 : vector<16xf32> to vector<16x1xf32>
    %68 = vector.broadcast %67 : vector<16x1xf32> to vector<16x16xf32>
    %69 = arith.subf %65, %68 : vector<16x16xf32>
    %70 = math.exp %69 : vector<16x16xf32>
    %cst_17 = arith.constant dense<0.000000e+00> : vector<16xf32>
    %71 = vector.multi_reduction <add>, %70, %cst_17 [1] : vector<16x16xf32> to vector<16xf32>
    %72 = vector.shape_cast %71 : vector<16xf32> to vector<16x1xf32>
    %73 = arith.mulf %70, %2 : vector<16x16xf32>
    %cst_18 = arith.constant dense<0.000000e+00> : vector<16xf32>
    %74 = vector.multi_reduction <add>, %73, %cst_18 [1] : vector<16x16xf32> to vector<16xf32>
    %75 = vector.shape_cast %74 : vector<16xf32> to vector<16x1xf32>
    %cst_19 = arith.constant dense<0.000000e+00> : vector<16x16xf32>
    %76 = tpu.matmul %70, %44, %cst_19 {dimension_numbers = #tpu.dot_dimension_numbers<[1], [0], [0], [1], [0, 0, 1, 1], [], []>} : vector<16x16xf32>, vector<16x16xf32>, vector<16x16xf32> -> vector<16x16xf32>
    %77 = vector.broadcast %75 : vector<16x1xf32> to vector<16x16xf32>
    %78 = vector.broadcast %9 : vector<1x16xf32> to vector<16x16xf32>
    %79 = arith.mulf %77, %78 : vector<16x16xf32>
    %80 = arith.addf %76, %79 : vector<16x16xf32>
    %81 = tpu.reciprocal %72 : vector<16x1xf32> -> vector<16x1xf32>
    %82 = vector.broadcast %81 : vector<16x1xf32> to vector<16x16xf32>
    %83 = arith.mulf %80, %82 : vector<16x16xf32>
    %cst_20 = arith.constant dense<0.000000e+00> : vector<16x16xf32>
    %84 = tpu.matmul %56, %53, %cst_20 {dimension_numbers = #tpu.dot_dimension_numbers<[1], [1], [0], [0], [0, 0, 1, 0], [], []>} : vector<16x16xf32>, vector<16x16xf32>, vector<16x16xf32> -> vector<16x16xf32>
    %85 = vector.broadcast %10 : vector<1x16xf32> to vector<16x16xf32>
    %86 = arith.mulf %50, %85 : vector<16x16xf32>
    %cst_21 = arith.constant dense<0.000000e+00> : vector<16xf32>
    %87 = vector.multi_reduction <add>, %86, %cst_21 [1] : vector<16x16xf32> to vector<16xf32>
    %88 = vector.shape_cast %87 : vector<16xf32> to vector<16x1xf32>
    %89 = vector.broadcast %88 : vector<16x1xf32> to vector<16x16xf32>
    %90 = arith.mulf %2, %89 : vector<16x16xf32>
    %91 = arith.addf %84, %90 : vector<16x16xf32>
    %92 = arith.addf %91, %19 : vector<16x16xf32>
    %cst_22 = arith.constant dense<0xFF800000> : vector<16xf32>
    %93 = vector.multi_reduction <maximumf>, %92, %cst_22 [1] : vector<16x16xf32> to vector<16xf32>
    %94 = vector.shape_cast %93 : vector<16xf32> to vector<16x1xf32>
    %95 = vector.broadcast %94 : vector<16x1xf32> to vector<16x16xf32>
    %96 = arith.subf %92, %95 : vector<16x16xf32>
    %97 = math.exp %96 : vector<16x16xf32>
    %cst_23 = arith.constant dense<0.000000e+00> : vector<16xf32>
    %98 = vector.multi_reduction <add>, %97, %cst_23 [1] : vector<16x16xf32> to vector<16xf32>
    %99 = vector.shape_cast %98 : vector<16xf32> to vector<16x1xf32>
    %100 = arith.mulf %97, %2 : vector<16x16xf32>
    %cst_24 = arith.constant dense<0.000000e+00> : vector<16xf32>
    %101 = vector.multi_reduction <add>, %100, %cst_24 [1] : vector<16x16xf32> to vector<16xf32>
    %102 = vector.shape_cast %101 : vector<16xf32> to vector<16x1xf32>
    %cst_25 = arith.constant dense<0.000000e+00> : vector<16x16xf32>
    %103 = tpu.matmul %97, %45, %cst_25 {dimension_numbers = #tpu.dot_dimension_numbers<[1], [0], [0], [1], [0, 0, 1, 1], [], []>} : vector<16x16xf32>, vector<16x16xf32>, vector<16x16xf32> -> vector<16x16xf32>
    %104 = vector.broadcast %102 : vector<16x1xf32> to vector<16x16xf32>
    %105 = vector.broadcast %10 : vector<1x16xf32> to vector<16x16xf32>
    %106 = arith.mulf %104, %105 : vector<16x16xf32>
    %107 = arith.addf %103, %106 : vector<16x16xf32>
    %108 = tpu.reciprocal %99 : vector<16x1xf32> -> vector<16x1xf32>
    %109 = vector.broadcast %108 : vector<16x1xf32> to vector<16x16xf32>
    %110 = arith.mulf %107, %109 : vector<16x16xf32>
    %111 = arith.addf %83, %110 : vector<16x16xf32>
    %112 = vector.broadcast %11 : vector<1x16xf32> to vector<16x16xf32>
    %113 = arith.addf %111, %112 : vector<16x16xf32>
    %cst_26 = arith.constant dense<0.000000e+00> : vector<16x32xf32>
    %114 = tpu.matmul %113, %5, %cst_26 {dimension_numbers = #tpu.dot_dimension_numbers<[1], [0], [0], [1], [0, 0, 1, 1], [], []>} : vector<16x16xf32>, vector<16x32xf32>, vector<16x32xf32> -> vector<16x32xf32>
    %115 = vector.broadcast %12 : vector<1x32xf32> to vector<16x32xf32>
    %116 = arith.addf %114, %115 : vector<16x32xf32>
    %117 = vector.broadcast %13 : vector<1x32xf32> to vector<16x32xf32>
    %118 = arith.mulf %116, %117 : vector<16x32xf32>
    %119 = vector.broadcast %14 : vector<1x32xf32> to vector<16x32xf32>
    %120 = arith.mulf %20, %119 : vector<16x32xf32>
    %121 = arith.addf %118, %120 : vector<16x32xf32>
    %cst_27 = arith.constant dense<0.000000e+00> : vector<16xf32>
    %122 = vector.multi_reduction <add>, %121, %cst_27 [1] : vector<16x32xf32> to vector<16xf32>
    %123 = vector.shape_cast %122 : vector<16xf32> to vector<16x1xf32>
    %124 = arith.negf %123 : vector<16x1xf32>
    %125 = math.exp %124 : vector<16x1xf32>
    %cst_28 = arith.constant 1.000000e+00 : f32
    %126 = vector.broadcast %cst_28 : f32 to vector<16x1xf32>
    %127 = arith.addf %126, %125 : vector<16x1xf32>
    %128 = arith.divf %126, %127 : vector<16x1xf32>
    %129 = arith.subf %116, %20 : vector<16x32xf32>
    %130 = vector.broadcast %128 : vector<16x1xf32> to vector<16x32xf32>
    %131 = arith.mulf %129, %130 : vector<16x32xf32>
    %132 = arith.addf %20, %131 : vector<16x32xf32>
    %cst_29 = arith.constant dense<0.000000e+00> : vector<16x128xf32>
    %133 = tpu.matmul %132, %6, %cst_29 {dimension_numbers = #tpu.dot_dimension_numbers<[1], [0], [0], [1], [0, 0, 1, 1], [], []>} : vector<16x32xf32>, vector<32x128xf32>, vector<16x128xf32> -> vector<16x128xf32>
    %c0_30 = arith.constant 0 : index
    %c0_31 = arith.constant 0 : index
    %134 = vector.load %arg3[%c0_30, %c0_31] : memref<16x128xf32, #tpu.memory_space<vmem>>, vector<16x128xf32>
    tpu.vector_store %arg3[%c0_30, %c0_31], %133 {strides = array<i32>} : memref<16x128xf32, #tpu.memory_space<vmem>>, vector<16x128xf32>,
    return
  }
  func.func @transform_0(%arg0: i32) -> (i32, i32) {
    %c0_i32 = arith.constant 0 : i32
    %c0_i32_0 = arith.constant 0 : i32
    %c0_i32_1 = arith.constant 0 : i32
    return %c0_i32, %c0_i32_0 : i32, i32
  }
  func.func @transform_1(%arg0: i32) -> (i32, i32) {
    %c0_i32 = arith.constant 0 : i32
    %c0_i32_0 = arith.constant 0 : i32
    %c0_i32_1 = arith.constant 0 : i32
    return %c0_i32, %c0_i32_0 : i32, i32
  }
  func.func @transform_2(%arg0: i32) -> (i32, i32) {
    %c0_i32 = arith.constant 0 : i32
    %c0_i32_0 = arith.constant 0 : i32
    %c0_i32_1 = arith.constant 0 : i32
    return %c0_i32, %c0_i32_0 : i32, i32
  }
}

</mosaic_0001>

<llo_original>
// kernel: gt_dynamics_forward.1
$region0: #{gt_dynamics_forward.1}
  #allocation0 [shape = 'u32[]', space=smem, size = 0x4, offset = 0x4, fixed_abs, tag = 'smem constant byte address 0x4 - core index']
  #allocation1 [shape = 'u32[144,128]{1,0:T(1,128)}', space=vmem, size = 0x12000, scoped, tag = 'internal scratch']
  %s0 = inlined_call_operand.vmem [shape: f32[16,128], index: 0, kind: input, shape index: {}]
  %s1 = inlined_call_operand.vmem [shape: f32[112,128], index: 1, kind: input, shape index: {}]
  %s2 = inlined_call_operand.vmem [shape: f32[16,128], index: 2, kind: output, shape index: {}]
  %s3 = sld [smem:[#allocation0]]
  $region18: #{gt_dynamics_forward.1} parent=0
    _
  %s5 = ssub.s32 1, %s3
  %s6 = scalar_select 0, %s5, %s3
  // Predicated region
  $region2: #{gt_dynamics_forward.1} parent=0 // pred_check
    _
  $region3: #{gt_dynamics_forward.1} parent=0 // pred_check_branch
    %8 = sbr.rel (0) target = $region5
  $region4: #{gt_dynamics_forward.1} parent=0 // pred_region
    _
  $region5: #{gt_dynamics_forward.1} parent=0 // pred_fallthru
    _
  // Predicated region
  $region6: #{gt_dynamics_forward.1} parent=0 // pred_check
    _
  $region7: #{gt_dynamics_forward.1} parent=0 // pred_check_branch
    %10 = sbr.rel (0) target = $region9
  $region8: #{gt_dynamics_forward.1} parent=0 // pred_region
    _
  $region9: #{gt_dynamics_forward.1} parent=0 // pred_fallthru
    _
  %v11 = vld [vmem:[%s0] sm:$0xff]
  %v12 = vld [vmem:[%s0 + $0x8] sm:$0xff]
  %v13 = vld [vmem:[%s1] sm:$0xff]
  %v14 = vld [vmem:[%s1 + $0x8] sm:$0xff]
  %v15 = vld [vmem:[%s1 + $0x10] sm:$0xff]
  %v16 = vld [vmem:[%s1 + $0x18] sm:$0xff]
  %v17 = vld [vmem:[%s1 + $0x20] sm:$0xff]
  %v18 = vld [vmem:[%s1 + $0x28] sm:$0xff]
  %v19 = vld [vmem:[%s1 + $0x30] sm:$0xff]
  %v20 = vld [vmem:[%s1 + $0x38] sm:$0xff]
  %v21 = vld [vmem:[%s1 + $0x40] sm:$0xff]
  %v22 = vld [vmem:[%s1 + $0x48] sm:$0xff]
  %v23 = vld [vmem:[%s1 + $0x50] sm:$0xff]
  %v24 = vld [vmem:[%s1 + $0x58] sm:$0xff]
  %v25 = vld [vmem:[%s1 + $0x60] sm:$0xff]
  %v26 = vld [vmem:[%s1 + $0x68] sm:$0xff]
  %vm27 = vcmask 64512
  %v29 = vsel %vm27, %v11, 0
  %v32 = vsel %vm27, %v12, 0
  %34 = vmatprep.subr.mxu0 0.0
  %35 = vmatpush1.msra.mxu0 0.0
  %36 = vmatprep.subr.mxu0 0.0
  %37 = vmatpush1.msra.mxu0 0.0
  %38 = vmatprep.subr.mxu0 0.0
  %39 = vmatpush1.msra.mxu0 0.0
  %40 = vmatprep.subr.mxu0 0.0
  %41 = vmatpush1.msra.mxu0 0.0
  %42 = vmatprep.subr.mxu0 0.0
  %43 = vmatpush1.msra.mxu0 0.0
  %44 = vmatprep.subr.mxu0 0.0
  %45 = vmatpush1.msra.mxu0 0.0
  %46 = vmatprep.subr.mxu0 0.0
  %47 = vmatpush1.msra.mxu0 0.0
  %48 = vmatprep.subr.mxu0 0.0
  %49 = vmatpush1.msra.mxu0 0.0
  %50 = vmatprep.subr.mxu0 0.0
  %51 = vmatpush1.msra.mxu0 0.0
  %52 = vmatprep.subr.mxu0 0.0
  %53 = vmatpush1.msra.mxu0 0.0
  %54 = vmatprep.subr.mxu0 0.0
  %55 = vmatpush1.msra.mxu0 0.0
  %56 = vmatprep.subr.mxu0 0.0
  %57 = vmatpush1.msra.mxu0 0.0
  %58 = vmatprep.subr.mxu0 0.0
  %59 = vmatpush1.msra.mxu0 0.0
  %60 = vmatprep.subr.mxu0 0.0
  %61 = vmatpush1.msra.mxu0 0.0
  %62 = vmatprep.subr.mxu0 0.0
  %63 = vmatpush1.msra.mxu0 0.0
  %64 = vmatprep.subr.mxu0 0.0
  %65 = vmatpush1.msra.mxu0 %v13
  %66 = vmatprep.subr.mxu0 0.0
  %67 = vmatpush2.msra.mxu0 0.0
  %68 = vmatprep.subr.mxu0 0.0
  %69 = vmatpush2.msra.mxu0 0.0
  %70 = vmatprep.subr.mxu0 0.0
  %71 = vmatpush2.msra.mxu0 0.0
  %72 = vmatprep.subr.mxu0 0.0
  %73 = vmatpush2.msra.mxu0 0.0
  %74 = vmatprep.subr.mxu0 0.0
  %75 = vmatpush2.msra.mxu0 0.0
  %76 = vmatprep.subr.mxu0 0.0
  %77 = vmatpush2.msra.mxu0 0.0
  %78 = vmatprep.subr.mxu0 0.0
  %79 = vmatpush2.msra.mxu0 0.0
  %80 = vmatprep.subr.mxu0 0.0
  %81 = vmatpush2.msra.mxu0 0.0
  %82 = vmatprep.subr.mxu0 0.0
  %83 = vmatpush2.msra.mxu0 0.0
  %84 = vmatprep.subr.mxu0 0.0
  %85 = vmatpush2.msra.mxu0 0.0
  %86 = vmatprep.subr.mxu0 0.0
  %87 = vmatpush2.msra.mxu0 0.0
  %88 = vmatprep.subr.mxu0 0.0
  %89 = vmatpush2.msra.mxu0 0.0
  %90 = vmatprep.subr.mxu0 0.0
  %91 = vmatpush2.msra.mxu0 0.0
  %92 = vmatprep.subr.mxu0 0.0
  %93 = vmatpush2.msra.mxu0 0.0
  %94 = vmatprep.subr.mxu0 0.0
  %95 = vmatpush2.msra.mxu0 0.0
  %96 = vmatprep.subr.mxu0 0.0
  %97 = vmatpush2.msra.mxu0 0.0
  %98 = vmatprep.mubr.f32.mxu0 0.0
  %99 = vmatmul.mubr.f32.gmra.mxu0 %v29
  %v100 = vpop.f32.mrf.mxu0
  %v101 = vadd.f32 0.0, %v100
  %v102 = vpop.f32.mrf.mxu0
  %103 = vmatprep.mubr.f32.mxu0 0.0
  %104 = vmatmul.mubr.f32.gmra.mxu0 %v32
  %v105 = vpop.f32.mrf.mxu0
  %v106 = vadd.f32 0.0, %v105
  %v107 = vpop.f32.mrf.mxu0
  %108 = vdwg.mxu0
  %vm109 = vcmask 261120
  %v110 = vsel %vm109, %v101, 0.0
  %111 = vadd.xlane.f32.xlu0 %v110
  %v112 = vpop.xlane.xlu0 %111
  %v113 = vsel %vm109, %v106, 0.0
  %114 = vadd.xlane.f32.xlu0 %v113
  %v115 = vpop.xlane.xlu0 %114
  %v116 = vrcp.pop 32.0
  %v117 = vmul.f32 %v112, %v116
  %v118 = vmul.f32 %v115, %v116
  %v119 = vsub.f32 %v101, %v117
  %v120 = vsub.f32 %v106, %v118
  %v121 = vmul.f32 %v119, %v119
  %v122 = vmul.f32 %v120, %v120
  %v123 = vsel %vm109, %v121, 0.0
  %124 = vadd.xlane.f32.xlu0 %v123
  %v125 = vpop.xlane.xlu0 %124
  %v126 = vsel %vm109, %v122, 0.0
  %127 = vadd.xlane.f32.xlu0 %v126
  %v128 = vpop.xlane.xlu0 %127
  %v129 = vmul.f32 %v125, %v116
  %v130 = vmul.f32 %v128, %v116
  %v131 = vadd.f32 %v129, 1e-05
  %v132 = vadd.f32 %v130, 1e-05
  %v133 = vrsqrt.pop %v131
  %v134 = vrsqrt.pop %v132
  %v135 = vmul.f32 %v119, %v133
  %v136 = vmul.f32 %v120, %v134
  %v137 = vlaneseq
  %v138 = vshrl.u32 %v137, 7
  %v139 = vsub.s32 0, %v138
  %v140 = vrot.slane %v24, %v139
  %v142 = vsel %vm109, %v135, 0
  %v145 = vsel %vm109, %v136, 0
  %147 = vmatprep.subr.mxu0 0.0
  %148 = vmatpush1.msra.mxu0 0.0
  %149 = vmatprep.subr.mxu0 0.0
  %150 = vmatpush1.msra.mxu0 0.0
  %151 = vmatprep.subr.mxu0 0.0
  %152 = vmatpush1.msra.mxu0 0.0
  %153 = vmatprep.subr.mxu0 0.0
  %154 = vmatpush1.msra.mxu0 0.0
  %155 = vmatprep.subr.mxu0 0.0
  %156 = vmatpush1.msra.mxu0 0.0
  %157 = vmatprep.subr.mxu0 0.0
  %158 = vmatpush1.msra.mxu0 0.0
  %159 = vmatprep.subr.mxu0 0.0
  %160 = vmatpush1.msra.mxu0 0.0
  %161 = vmatprep.subr.mxu0 0.0
  %162 = vmatpush1.msra.mxu0 0.0
  %163 = vmatprep.subr.mxu0 0.0
  %164 = vmatpush1.msra.mxu0 0.0
  %165 = vmatprep.subr.mxu0 0.0
  %166 = vmatpush1.msra.mxu0 0.0
  %167 = vmatprep.subr.mxu0 0.0
  %168 = vmatpush1.msra.mxu0 0.0
  %169 = vmatprep.subr.mxu0 0.0
  %170 = vmatpush1.msra.mxu0 0.0
  %171 = vmatprep.subr.mxu0 0.0
  %172 = vmatpush1.msra.mxu0 %v17
  %173 = vmatprep.subr.mxu0 0.0
  %174 = vmatpush1.msra.mxu0 %v16
  %175 = vmatprep.subr.mxu0 0.0
  %176 = vmatpush1.msra.mxu0 %v15
  %177 = vmatprep.subr.mxu0 0.0
  %178 = vmatpush1.msra.mxu0 %v14
  %179 = vmatprep.subr.mxu0 0.0
  %180 = vmatpush2.msra.mxu0 0.0
  %181 = vmatprep.subr.mxu0 0.0
  %182 = vmatpush2.msra.mxu0 0.0
  %183 = vmatprep.subr.mxu0 0.0
  %184 = vmatpush2.msra.mxu0 0.0
  %185 = vmatprep.subr.mxu0 0.0
  %186 = vmatpush2.msra.mxu0 0.0
  %187 = vmatprep.subr.mxu0 0.0
  %188 = vmatpush2.msra.mxu0 0.0
  %189 = vmatprep.subr.mxu0 0.0
  %190 = vmatpush2.msra.mxu0 0.0
  %191 = vmatprep.subr.mxu0 0.0
  %192 = vmatpush2.msra.mxu0 0.0
  %193 = vmatprep.subr.mxu0 0.0
  %194 = vmatpush2.msra.mxu0 0.0
  %195 = vmatprep.subr.mxu0 0.0
  %196 = vmatpush2.msra.mxu0 0.0
  %197 = vmatprep.subr.mxu0 0.0
  %198 = vmatpush2.msra.mxu0 0.0
  %199 = vmatprep.subr.mxu0 0.0
  %200 = vmatpush2.msra.mxu0 0.0
  %201 = vmatprep.subr.mxu0 0.0
  %202 = vmatpush2.msra.mxu0 0.0
  %203 = vmatprep.subr.mxu0 0.0
  %204 = vmatpush2.msra.mxu0 0.0
  %205 = vmatprep.subr.mxu0 0.0
  %206 = vmatpush2.msra.mxu0 0.0
  %207 = vmatprep.subr.mxu0 0.0
  %208 = vmatpush2.msra.mxu0 0.0
  %209 = vmatprep.subr.mxu0 0.0
  %210 = vmatpush2.msra.mxu0 0.0
  %211 = vmatprep.mubr.f32.mxu0 0.0
  %212 = vmatmul.mubr.f32.gmra.mxu0 %v142
  %v213 = vpop.f32.mrf.mxu0
  %v214 = vadd.f32 %v140, %v213
  %v215 = vpop.f32.mrf.mxu0
  %216 = vmatprep.mubr.f32.mxu0 0.0
  %217 = vmatmul.mubr.f32.gmra.mxu0 %v145
  %v218 = vpop.f32.mrf.mxu0
  %v219 = vadd.f32 %v140, %v218
  %v220 = vpop.f32.mrf.mxu0
  %221 = vdwg.mxu0
  %v222 = vmul.f32 %v214, %v25
  %v223 = vmul.f32 %v219, %v26
  %226 = vrot.lane.b32.xlu0 %v25, 48
  %v227 = vpop.permute.xlu0 %226
  %228 = vrot.lane.b32.xlu0 %v26, 48
  %v229 = vpop.permute.xlu0 %228
  %v232 = vmul.f32 %v214, %v227
  %v233 = vmul.f32 %v219, %v229
  %236 = vrot.lane.b32.xlu0 %v232, 64
  %v237 = vpop.permute.xlu0 %236
  %238 = vrot.lane.b32.xlu0 %v233, 64
  %v239 = vpop.permute.xlu0 %238
  %v242 = vadd.f32 %v222, %v237
  %v243 = vadd.f32 %v223, %v239
  %244 = vrot.lane.b32.xlu0 %v25, 16
  %v245 = vpop.permute.xlu0 %244
  %246 = vrot.lane.b32.xlu0 %v26, 16
  %v247 = vpop.permute.xlu0 %246
  %v250 = vmul.f32 %v214, %v245
  %v251 = vmul.f32 %v219, %v247
  %252 = vrot.lane.b32.xlu0 %v25, 64
  %v253 = vpop.permute.xlu0 %252
  %254 = vrot.lane.b32.xlu0 %v26, 64
  %v255 = vpop.permute.xlu0 %254
  %v258 = vmul.f32 %v214, %v253
  %v259 = vmul.f32 %v219, %v255
  %262 = vrot.lane.b32.xlu0 %v258, 64
  %v263 = vpop.permute.xlu0 %262
  %264 = vrot.lane.b32.xlu0 %v259, 64
  %v265 = vpop.permute.xlu0 %264
  %v268 = vadd.f32 %v250, %v263
  %v269 = vadd.f32 %v251, %v265
  %v270 = vlaneseq
  %v271 = vshrl.u32 %v270, 7
  %v272 = vsub.s32 7, %v271
  %v273 = vrot.slane %v24, %v272
  %v274 = vmul.f32 %v242, %v273
  %v275 = vmul.f32 %v243, %v273
  %v276 = vsub.f32 %v242, %v274
  %v277 = vsub.f32 %v243, %v275
  %v278 = vlaneseq
  %v279 = vshrl.u32 %v278, 7
  %v280 = vsub.s32 1, %v279
  %v281 = vrot.slane %v24, %v280
  %v282 = vmul.f32 %v242, %v281
  %v283 = vmul.f32 %v243, %v281
  %vm284 = vcmask 130048
  %v285 = vsel %vm284, %v282, 0.0
  %286 = vadd.xlane.f32.xlu0 %v285
  %v287 = vpop.xlane.xlu0 %286
  %v288 = vsel %vm284, %v283, 0.0
  %289 = vadd.xlane.f32.xlu0 %v288
  %v290 = vpop.xlane.xlu0 %289
  %v291 = vmul.f32 %v11, %v287
  %v292 = vmul.f32 %v12, %v290
  %295 = vrot.lane.b32.xlu0 %v268, 112
  %v296 = vpop.permute.xlu0 %295
  %297 = vrot.lane.b32.xlu0 %v269, 112
  %v298 = vpop.permute.xlu0 %297
  %301 = vrot.lane.b32.xlu0 %v291, 120
  %v302 = vpop.permute.xlu0 %301
  %303 = vrot.lane.b32.xlu0 %v292, 120
  %v304 = vpop.permute.xlu0 %303
  %v308 = vsel %vm284, %v274, 0
  %v311 = vsel %vm284, %v275, 0
  %v313 = vsel %vm284, %v296, 0
  %v315 = vsel %vm284, %v298, 0
  %317 = vmatprep.subr.mxu0 0.0
  %318 = vmatpush1.xpose.msra.mxu0 0.0
  %319 = vmatprep.subr.mxu0 0.0
  %320 = vmatpush1.xpose.msra.mxu0 0.0
  %321 = vmatprep.subr.mxu0 0.0
  %322 = vmatpush1.xpose.msra.mxu0 0.0
  %323 = vmatprep.subr.mxu0 0.0
  %324 = vmatpush1.xpose.msra.mxu0 0.0
  %325 = vmatprep.subr.mxu0 0.0
  %326 = vmatpush1.xpose.msra.mxu0 0.0
  %327 = vmatprep.subr.mxu0 0.0
  %328 = vmatpush1.xpose.msra.mxu0 0.0
  %329 = vmatprep.subr.mxu0 0.0
  %330 = vmatpush1.xpose.msra.mxu0 0.0
  %331 = vmatprep.subr.mxu0 0.0
  %332 = vmatpush1.xpose.msra.mxu0 0.0
  %333 = vmatprep.subr.mxu0 0.0
  %334 = vmatpush1.xpose.msra.mxu0 0.0
  %335 = vmatprep.subr.mxu0 0.0
  %336 = vmatpush1.xpose.msra.mxu0 0.0
  %337 = vmatprep.subr.mxu0 0.0
  %338 = vmatpush1.xpose.msra.mxu0 0.0
  %339 = vmatprep.subr.mxu0 0.0
  %340 = vmatpush1.xpose.msra.mxu0 0.0
  %341 = vmatprep.subr.mxu0 0.0
  %342 = vmatpush1.xpose.msra.mxu0 0.0
  %343 = vmatprep.subr.mxu0 0.0
  %344 = vmatpush1.xpose.msra.mxu0 0.0
  %345 = vmatprep.subr.mxu0 0.0
  %346 = vmatpush1.xpose.msra.mxu0 %v315
  %347 = vmatprep.subr.mxu0 0.0
  %348 = vmatpush1.xpose.msra.mxu0 %v313
  %349 = vmatprep.subr.mxu0 0.0
  %350 = vmatpush2.xpose.msra.mxu0 0.0
  %351 = vmatprep.subr.mxu0 0.0
  %352 = vmatpush2.xpose.msra.mxu0 0.0
  %353 = vmatprep.subr.mxu0 0.0
  %354 = vmatpush2.xpose.msra.mxu0 0.0
  %355 = vmatprep.subr.mxu0 0.0
  %356 = vmatpush2.xpose.msra.mxu0 0.0
  %357 = vmatprep.subr.mxu0 0.0
  %358 = vmatpush2.xpose.msra.mxu0 0.0
  %359 = vmatprep.subr.mxu0 0.0
  %360 = vmatpush2.xpose.msra.mxu0 0.0
  %361 = vmatprep.subr.mxu0 0.0
  %362 = vmatpush2.xpose.msra.mxu0 0.0
  %363 = vmatprep.subr.mxu0 0.0
  %364 = vmatpush2.xpose.msra.mxu0 0.0
  %365 = vmatprep.subr.mxu0 0.0
  %366 = vmatpush2.xpose.msra.mxu0 0.0
  %367 = vmatprep.subr.mxu0 0.0
  %368 = vmatpush2.xpose.msra.mxu0 0.0
  %369 = vmatprep.subr.mxu0 0.0
  %370 = vmatpush2.xpose.msra.mxu0 0.0
  %371 = vmatprep.subr.mxu0 0.0
  %372 = vmatpush2.xpose.msra.mxu0 0.0
  %373 = vmatprep.subr.mxu0 0.0
  %374 = vmatpush2.xpose.msra.mxu0 0.0
  %375 = vmatprep.subr.mxu0 0.0
  %376 = vmatpush2.xpose.msra.mxu0 0.0
  %377 = vmatprep.subr.mxu0 0.0
  %378 = vmatpush2.xpose.msra.mxu0 0.0
  %379 = vmatprep.subr.mxu0 0.0
  %380 = vmatpush2.xpose.msra.mxu0 0.0
  %381 = vmatprep.mubr.f32.mxu0 0.0
  %382 = vmatmul.mubr.f32.gmra.mxu0 %v308
  %v383 = vpop.f32.mrf.mxu0
  %v384 = vadd.f32 %v302, %v383
  %v385 = vpop.f32.mrf.mxu0
  %386 = vmatprep.mubr.f32.mxu0 0.0
  %387 = vmatmul.mubr.f32.gmra.mxu0 %v311
  %v388 = vpop.f32.mrf.mxu0
  %v389 = vadd.f32 %v304, %v388
  %v390 = vpop.f32.mrf.mxu0
  %391 = vdwg.mxu0
  %392 = vrot.lane.b32.xlu0 %v25, 96
  %v393 = vpop.permute.xlu0 %392
  %394 = vrot.lane.b32.xlu0 %v26, 96
  %v395 = vpop.permute.xlu0 %394
  %v398 = vadd.f32 %v384, %v393
  %v399 = vadd.f32 %v389, %v395
  %v400 = vsel %vm284, %v398, -inf
  %401 = vmax.xlane.f32.xlu0 %v400
  %v402 = vpop.xlane.xlu0 %401
  %v403 = vsel %vm284, %v399, -inf
  %404 = vmax.xlane.f32.xlu0 %v403
  %v405 = vpop.xlane.xlu0 %404
  %v406 = vsub.f32 %v398, %v402
  %v407 = vsub.f32 %v399, %v405
  %v408 = vmul.f32 %v406, 1.442695
  %v409 = vpow.pop %v408
  %v410 = vmul.f32 %v407, 1.442695
  %v411 = vpow.pop %v410
  %v412 = vsel %vm284, %v409, 0.0
  %413 = vadd.xlane.f32.xlu0 %v412
  %v414 = vpop.xlane.xlu0 %413
  %v415 = vsel %vm284, %v411, 0.0
  %416 = vadd.xlane.f32.xlu0 %v415
  %v417 = vpop.xlane.xlu0 %416
  %418 = vrot.lane.b32.xlu0 %v11, 120
  %v419 = vpop.permute.xlu0 %418
  %420 = vrot.lane.b32.xlu0 %v12, 120
  %v421 = vpop.permute.xlu0 %420
  %v424 = vmul.f32 %v409, %v419
  %v425 = vmul.f32 %v411, %v421
  %v426 = vsel %vm284, %v424, 0.0
  %427 = vadd.xlane.f32.xlu0 %v426
  %v428 = vpop.xlane.xlu0 %427
  %v429 = vsel %vm284, %v425, 0.0
  %430 = vadd.xlane.f32.xlu0 %v429
  %v431 = vpop.xlane.xlu0 %430
  %v432 = vmul.f32 %v428, %v281
  %v433 = vmul.f32 %v431, %v281
  %436 = vrot.lane.b32.xlu0 %v214, 96
  %v437 = vpop.permute.xlu0 %436
  %438 = vrot.lane.b32.xlu0 %v219, 96
  %v439 = vpop.permute.xlu0 %438
  %v443 = vsel %vm284, %v409, 0
  %v446 = vsel %vm284, %v411, 0
  %448 = vmatprep.subr.mxu0 0.0
  %449 = vmatpush1.msra.mxu0 0.0
  %450 = vmatprep.subr.mxu0 0.0
  %451 = vmatpush1.msra.mxu0 0.0
  %452 = vmatprep.subr.mxu0 0.0
  %453 = vmatpush1.msra.mxu0 0.0
  %454 = vmatprep.subr.mxu0 0.0
  %455 = vmatpush1.msra.mxu0 0.0
  %456 = vmatprep.subr.mxu0 0.0
  %457 = vmatpush1.msra.mxu0 0.0
  %458 = vmatprep.subr.mxu0 0.0
  %459 = vmatpush1.msra.mxu0 0.0
  %460 = vmatprep.subr.mxu0 0.0
  %461 = vmatpush1.msra.mxu0 0.0
  %462 = vmatprep.subr.mxu0 0.0
  %463 = vmatpush1.msra.mxu0 0.0
  %464 = vmatprep.subr.mxu0 0.0
  %465 = vmatpush1.msra.mxu0 0.0
  %466 = vmatprep.subr.mxu0 0.0
  %467 = vmatpush1.msra.mxu0 0.0
  %468 = vmatprep.subr.mxu0 0.0
  %469 = vmatpush1.msra.mxu0 0.0
  %470 = vmatprep.subr.mxu0 0.0
  %471 = vmatpush1.msra.mxu0 0.0
  %472 = vmatprep.subr.mxu0 0.0
  %473 = vmatpush1.msra.mxu0 0.0
  %474 = vmatprep.subr.mxu0 0.0
  %475 = vmatpush1.msra.mxu0 0.0
  %476 = vmatprep.subr.mxu0 0.0
  %477 = vmatpush1.msra.mxu0 %v439
  %478 = vmatprep.subr.mxu0 0.0
  %479 = vmatpush1.msra.mxu0 %v437
  %480 = vmatprep.subr.mxu0 0.0
  %481 = vmatpush2.msra.mxu0 0.0
  %482 = vmatprep.subr.mxu0 0.0
  %483 = vmatpush2.msra.mxu0 0.0
  %484 = vmatprep.subr.mxu0 0.0
  %485 = vmatpush2.msra.mxu0 0.0
  %486 = vmatprep.subr.mxu0 0.0
  %487 = vmatpush2.msra.mxu0 0.0
  %488 = vmatprep.subr.mxu0 0.0
  %489 = vmatpush2.msra.mxu0 0.0
  %490 = vmatprep.subr.mxu0 0.0
  %491 = vmatpush2.msra.mxu0 0.0
  %492 = vmatprep.subr.mxu0 0.0
  %493 = vmatpush2.msra.mxu0 0.0
  %494 = vmatprep.subr.mxu0 0.0
  %495 = vmatpush2.msra.mxu0 0.0
  %496 = vmatprep.subr.mxu0 0.0
  %497 = vmatpush2.msra.mxu0 0.0
  %498 = vmatprep.subr.mxu0 0.0
  %499 = vmatpush2.msra.mxu0 0.0
  %500 = vmatprep.subr.mxu0 0.0
  %501 = vmatpush2.msra.mxu0 0.0
  %502 = vmatprep.subr.mxu0 0.0
  %503 = vmatpush2.msra.mxu0 0.0
  %504 = vmatprep.subr.mxu0 0.0
  %505 = vmatpush2.msra.mxu0 0.0
  %506 = vmatprep.subr.mxu0 0.0
  %507 = vmatpush2.msra.mxu0 0.0
  %508 = vmatprep.subr.mxu0 0.0
  %509 = vmatpush2.msra.mxu0 0.0
  %510 = vmatprep.subr.mxu0 0.0
  %511 = vmatpush2.msra.mxu0 0.0
  %512 = vmatprep.mubr.f32.mxu0 0.0
  %513 = vmatmul.mubr.f32.gmra.mxu0 %v443
  %v514 = vpop.f32.mrf.mxu0
  %v515 = vadd.f32 %v432, %v514
  %v516 = vpop.f32.mrf.mxu0
  %517 = vmatprep.mubr.f32.mxu0 0.0
  %518 = vmatmul.mubr.f32.gmra.mxu0 %v446
  %v519 = vpop.f32.mrf.mxu0
  %v520 = vadd.f32 %v433, %v519
  %v521 = vpop.f32.mrf.mxu0
  %522 = vdwg.mxu0
  %v523 = vrcp.pop %v414
  %v524 = vrcp.pop %v417
  %v525 = vmul.f32 %v515, %v523
  %v526 = vmul.f32 %v520, %v524
  %v527 = vlaneseq
  %v528 = vshrl.u32 %v527, 7
  %v529 = vsub.s32 2, %v528
  %v530 = vrot.slane %v24, %v529
  %v531 = vmul.f32 %v242, %v530
  %v532 = vmul.f32 %v243, %v530
  %v533 = vsel %vm284, %v531, 0.0
  %534 = vadd.xlane.f32.xlu0 %v533
  %v535 = vpop.xlane.xlu0 %534
  %v536 = vsel %vm284, %v532, 0.0
  %537 = vadd.xlane.f32.xlu0 %v536
  %v538 = vpop.xlane.xlu0 %537
  %v539 = vmul.f32 %v11, %v535
  %v540 = vmul.f32 %v12, %v538
  %543 = vrot.lane.b32.xlu0 %v539, 120
  %v544 = vpop.permute.xlu0 %543
  %545 = vrot.lane.b32.xlu0 %v540, 120
  %v546 = vpop.permute.xlu0 %545
  %v550 = vsel %vm284, %v276, 0
  %v553 = vsel %vm284, %v277, 0
  %555 = vmatprep.subr.mxu0 0.0
  %556 = vmatpush1.xpose.msra.mxu0 0.0
  %557 = vmatprep.subr.mxu0 0.0
  %558 = vmatpush1.xpose.msra.mxu0 0.0
  %559 = vmatprep.subr.mxu0 0.0
  %560 = vmatpush1.xpose.msra.mxu0 0.0
  %561 = vmatprep.subr.mxu0 0.0
  %562 = vmatpush1.xpose.msra.mxu0 0.0
  %563 = vmatprep.subr.mxu0 0.0
  %564 = vmatpush1.xpose.msra.mxu0 0.0
  %565 = vmatprep.subr.mxu0 0.0
  %566 = vmatpush1.xpose.msra.mxu0 0.0
  %567 = vmatprep.subr.mxu0 0.0
  %568 = vmatpush1.xpose.msra.mxu0 0.0
  %569 = vmatprep.subr.mxu0 0.0
  %570 = vmatpush1.xpose.msra.mxu0 0.0
  %571 = vmatprep.subr.mxu0 0.0
  %572 = vmatpush1.xpose.msra.mxu0 0.0
  %573 = vmatprep.subr.mxu0 0.0
  %574 = vmatpush1.xpose.msra.mxu0 0.0
  %575 = vmatprep.subr.mxu0 0.0
  %576 = vmatpush1.xpose.msra.mxu0 0.0
  %577 = vmatprep.subr.mxu0 0.0
  %578 = vmatpush1.xpose.msra.mxu0 0.0
  %579 = vmatprep.subr.mxu0 0.0
  %580 = vmatpush1.xpose.msra.mxu0 0.0
  %581 = vmatprep.subr.mxu0 0.0
  %582 = vmatpush1.xpose.msra.mxu0 0.0
  %583 = vmatprep.subr.mxu0 0.0
  %584 = vmatpush1.xpose.msra.mxu0 %v315
  %585 = vmatprep.subr.mxu0 0.0
  %586 = vmatpush1.xpose.msra.mxu0 %v313
  %587 = vmatprep.subr.mxu0 0.0
  %588 = vmatpush2.xpose.msra.mxu0 0.0
  %589 = vmatprep.subr.mxu0 0.0
  %590 = vmatpush2.xpose.msra.mxu0 0.0
  %591 = vmatprep.subr.mxu0 0.0
  %592 = vmatpush2.xpose.msra.mxu0 0.0
  %593 = vmatprep.subr.mxu0 0.0
  %594 = vmatpush2.xpose.msra.mxu0 0.0
  %595 = vmatprep.subr.mxu0 0.0
  %596 = vmatpush2.xpose.msra.mxu0 0.0
  %597 = vmatprep.subr.mxu0 0.0
  %598 = vmatpush2.xpose.msra.mxu0 0.0
  %599 = vmatprep.subr.mxu0 0.0
  %600 = vmatpush2.xpose.msra.mxu0 0.0
  %601 = vmatprep.subr.mxu0 0.0
  %602 = vmatpush2.xpose.msra.mxu0 0.0
  %603 = vmatprep.subr.mxu0 0.0
  %604 = vmatpush2.xpose.msra.mxu0 0.0
  %605 = vmatprep.subr.mxu0 0.0
  %606 = vmatpush2.xpose.msra.mxu0 0.0
  %607 = vmatprep.subr.mxu0 0.0
  %608 = vmatpush2.xpose.msra.mxu0 0.0
  %609 = vmatprep.subr.mxu0 0.0
  %610 = vmatpush2.xpose.msra.mxu0 0.0
  %611 = vmatprep.subr.mxu0 0.0
  %612 = vmatpush2.xpose.msra.mxu0 0.0
  %613 = vmatprep.subr.mxu0 0.0
  %614 = vmatpush2.xpose.msra.mxu0 0.0
  %615 = vmatprep.subr.mxu0 0.0
  %616 = vmatpush2.xpose.msra.mxu0 0.0
  %617 = vmatprep.subr.mxu0 0.0
  %618 = vmatpush2.xpose.msra.mxu0 0.0
  %619 = vmatprep.mubr.f32.mxu0 0.0
  %620 = vmatmul.mubr.f32.gmra.mxu0 %v550
  %v621 = vpop.f32.mrf.mxu0
  %v622 = vadd.f32 %v544, %v621
  %v623 = vpop.f32.mrf.mxu0
  %624 = vmatprep.mubr.f32.mxu0 0.0
  %625 = vmatmul.mubr.f32.gmra.mxu0 %v553
  %v626 = vpop.f32.mrf.mxu0
  %v627 = vadd.f32 %v546, %v626
  %v628 = vpop.f32.mrf.mxu0
  %629 = vdwg.mxu0
  %v630 = vadd.f32 %v622, %v393
  %v631 = vadd.f32 %v627, %v395
  %v632 = vsel %vm284, %v630, -inf
  %633 = vmax.xlane.f32.xlu0 %v632
  %v634 = vpop.xlane.xlu0 %633
  %v635 = vsel %vm284, %v631, -inf
  %636 = vmax.xlane.f32.xlu0 %v635
  %v637 = vpop.xlane.xlu0 %636
  %v638 = vsub.f32 %v630, %v634
  %v639 = vsub.f32 %v631, %v637
  %v640 = vmul.f32 %v638, 1.442695
  %v641 = vpow.pop %v640
  %v642 = vmul.f32 %v639, 1.442695
  %v643 = vpow.pop %v642
  %v644 = vsel %vm284, %v641, 0.0
  %645 = vadd.xlane.f32.xlu0 %v644
  %v646 = vpop.xlane.xlu0 %645
  %v647 = vsel %vm284, %v643, 0.0
  %648 = vadd.xlane.f32.xlu0 %v647
  %v649 = vpop.xlane.xlu0 %648
  %v650 = vmul.f32 %v641, %v419
  %v651 = vmul.f32 %v643, %v421
  %v652 = vsel %vm284, %v650, 0.0
  %653 = vadd.xlane.f32.xlu0 %v652
  %v654 = vpop.xlane.xlu0 %653
  %v655 = vsel %vm284, %v651, 0.0
  %656 = vadd.xlane.f32.xlu0 %v655
  %v657 = vpop.xlane.xlu0 %656
  %v658 = vmul.f32 %v654, %v530
  %v659 = vmul.f32 %v657, %v530
  %660 = vrot.lane.b32.xlu0 %v214, 80
  %v661 = vpop.permute.xlu0 %660
  %662 = vrot.lane.b32.xlu0 %v219, 80
  %v663 = vpop.permute.xlu0 %662
  %v667 = vsel %vm284, %v641, 0
  %v670 = vsel %vm284, %v643, 0
  %672 = vmatprep.subr.mxu0 0.0
  %673 = vmatpush1.msra.mxu0 0.0
  %674 = vmatprep.subr.mxu0 0.0
  %675 = vmatpush1.msra.mxu0 0.0
  %676 = vmatprep.subr.mxu0 0.0
  %677 = vmatpush1.msra.mxu0 0.0
  %678 = vmatprep.subr.mxu0 0.0
  %679 = vmatpush1.msra.mxu0 0.0
  %680 = vmatprep.subr.mxu0 0.0
  %681 = vmatpush1.msra.mxu0 0.0
  %682 = vmatprep.subr.mxu0 0.0
  %683 = vmatpush1.msra.mxu0 0.0
  %684 = vmatprep.subr.mxu0 0.0
  %685 = vmatpush1.msra.mxu0 0.0
  %686 = vmatprep.subr.mxu0 0.0
  %687 = vmatpush1.msra.mxu0 0.0
  %688 = vmatprep.subr.mxu0 0.0
  %689 = vmatpush1.msra.mxu0 0.0
  %690 = vmatprep.subr.mxu0 0.0
  %691 = vmatpush1.msra.mxu0 0.0
  %692 = vmatprep.subr.mxu0 0.0
  %693 = vmatpush1.msra.mxu0 0.0
  %694 = vmatprep.subr.mxu0 0.0
  %695 = vmatpush1.msra.mxu0 0.0
  %696 = vmatprep.subr.mxu0 0.0
  %697 = vmatpush1.msra.mxu0 0.0
  %698 = vmatprep.subr.mxu0 0.0
  %699 = vmatpush1.msra.mxu0 0.0
  %700 = vmatprep.subr.mxu0 0.0
  %701 = vmatpush1.msra.mxu0 %v663
  %702 = vmatprep.subr.mxu0 0.0
  %703 = vmatpush1.msra.mxu0 %v661
  %704 = vmatprep.subr.mxu0 0.0
  %705 = vmatpush2.msra.mxu0 0.0
  %706 = vmatprep.subr.mxu0 0.0
  %707 = vmatpush2.msra.mxu0 0.0
  %708 = vmatprep.subr.mxu0 0.0
  %709 = vmatpush2.msra.mxu0 0.0
  %710 = vmatprep.subr.mxu0 0.0
  %711 = vmatpush2.msra.mxu0 0.0
  %712 = vmatprep.subr.mxu0 0.0
  %713 = vmatpush2.msra.mxu0 0.0
  %714 = vmatprep.subr.mxu0 0.0
  %715 = vmatpush2.msra.mxu0 0.0
  %716 = vmatprep.subr.mxu0 0.0
  %717 = vmatpush2.msra.mxu0 0.0
  %718 = vmatprep.subr.mxu0 0.0
  %719 = vmatpush2.msra.mxu0 0.0
  %720 = vmatprep.subr.mxu0 0.0
  %721 = vmatpush2.msra.mxu0 0.0
  %722 = vmatprep.subr.mxu0 0.0
  %723 = vmatpush2.msra.mxu0 0.0
  %724 = vmatprep.subr.mxu0 0.0
  %725 = vmatpush2.msra.mxu0 0.0
  %726 = vmatprep.subr.mxu0 0.0
  %727 = vmatpush2.msra.mxu0 0.0
  %728 = vmatprep.subr.mxu0 0.0
  %729 = vmatpush2.msra.mxu0 0.0
  %730 = vmatprep.subr.mxu0 0.0
  %731 = vmatpush2.msra.mxu0 0.0
  %732 = vmatprep.subr.mxu0 0.0
  %733 = vmatpush2.msra.mxu0 0.0
  %734 = vmatprep.subr.mxu0 0.0
  %735 = vmatpush2.msra.mxu0 0.0
  %736 = vmatprep.mubr.f32.mxu0 0.0
  %737 = vmatmul.mubr.f32.gmra.mxu0 %v667
  %v738 = vpop.f32.mrf.mxu0
  %v739 = vadd.f32 %v658, %v738
  %v740 = vpop.f32.mrf.mxu0
  %741 = vmatprep.mubr.f32.mxu0 0.0
  %742 = vmatmul.mubr.f32.gmra.mxu0 %v670
  %v743 = vpop.f32.mrf.mxu0
  %v744 = vadd.f32 %v659, %v743
  %v745 = vpop.f32.mrf.mxu0
  %746 = vdwg.mxu0
  %v747 = vrcp.pop %v646
  %v748 = vrcp.pop %v649
  %v749 = vmul.f32 %v739, %v747
  %v750 = vmul.f32 %v744, %v748
  %v751 = vadd.f32 %v525, %v749
  %v752 = vadd.f32 %v526, %v750
  %v753 = vlaneseq
  %v754 = vshrl.u32 %v753, 7
  %v755 = vsub.s32 3, %v754
  %v756 = vrot.slane %v24, %v755
  %v757 = vadd.f32 %v751, %v756
  %v758 = vadd.f32 %v752, %v756
  %v759 = vlaneseq
  %v760 = vshrl.u32 %v759, 7
  %v761 = vsub.s32 4, %v760
  %v762 = vrot.slane %v24, %v761
  %v764 = vsel %vm284, %v757, 0
  %v767 = vsel %vm284, %v758, 0
  %769 = vmatprep.subr.mxu0 0.0
  %770 = vmatpush1.msra.mxu0 0.0
  %771 = vmatprep.subr.mxu0 0.0
  %772 = vmatpush1.msra.mxu0 0.0
  %773 = vmatprep.subr.mxu0 0.0
  %774 = vmatpush1.msra.mxu0 0.0
  %775 = vmatprep.subr.mxu0 0.0
  %776 = vmatpush1.msra.mxu0 0.0
  %777 = vmatprep.subr.mxu0 0.0
  %778 = vmatpush1.msra.mxu0 0.0
  %779 = vmatprep.subr.mxu0 0.0
  %780 = vmatpush1.msra.mxu0 0.0
  %781 = vmatprep.subr.mxu0 0.0
  %782 = vmatpush1.msra.mxu0 0.0
  %783 = vmatprep.subr.mxu0 0.0
  %784 = vmatpush1.msra.mxu0 0.0
  %785 = vmatprep.subr.mxu0 0.0
  %786 = vmatpush1.msra.mxu0 0.0
  %787 = vmatprep.subr.mxu0 0.0
  %788 = vmatpush1.msra.mxu0 0.0
  %789 = vmatprep.subr.mxu0 0.0
  %790 = vmatpush1.msra.mxu0 0.0
  %791 = vmatprep.subr.mxu0 0.0
  %792 = vmatpush1.msra.mxu0 0.0
  %793 = vmatprep.subr.mxu0 0.0
  %794 = vmatpush1.msra.mxu0 0.0
  %795 = vmatprep.subr.mxu0 0.0
  %796 = vmatpush1.msra.mxu0 0.0
  %797 = vmatprep.subr.mxu0 0.0
  %798 = vmatpush1.msra.mxu0 %v19
  %799 = vmatprep.subr.mxu0 0.0
  %800 = vmatpush1.msra.mxu0 %v18
  %801 = vmatprep.subr.mxu0 0.0
  %802 = vmatpush2.msra.mxu0 0.0
  %803 = vmatprep.subr.mxu0 0.0
  %804 = vmatpush2.msra.mxu0 0.0
  %805 = vmatprep.subr.mxu0 0.0
  %806 = vmatpush2.msra.mxu0 0.0
  %807 = vmatprep.subr.mxu0 0.0
  %808 = vmatpush2.msra.mxu0 0.0
  %809 = vmatprep.subr.mxu0 0.0
  %810 = vmatpush2.msra.mxu0 0.0
  %811 = vmatprep.subr.mxu0 0.0
  %812 = vmatpush2.msra.mxu0 0.0
  %813 = vmatprep.subr.mxu0 0.0
  %814 = vmatpush2.msra.mxu0 0.0
  %815 = vmatprep.subr.mxu0 0.0
  %816 = vmatpush2.msra.mxu0 0.0
  %817 = vmatprep.subr.mxu0 0.0
  %818 = vmatpush2.msra.mxu0 0.0
  %819 = vmatprep.subr.mxu0 0.0
  %820 = vmatpush2.msra.mxu0 0.0
  %821 = vmatprep.subr.mxu0 0.0
  %822 = vmatpush2.msra.mxu0 0.0
  %823 = vmatprep.subr.mxu0 0.0
  %824 = vmatpush2.msra.mxu0 0.0
  %825 = vmatprep.subr.mxu0 0.0
  %826 = vmatpush2.msra.mxu0 0.0
  %827 = vmatprep.subr.mxu0 0.0
  %828 = vmatpush2.msra.mxu0 0.0
  %829 = vmatprep.subr.mxu0 0.0
  %830 = vmatpush2.msra.mxu0 0.0
  %831 = vmatprep.subr.mxu0 0.0
  %832 = vmatpush2.msra.mxu0 0.0
  %833 = vmatprep.mubr.f32.mxu0 0.0
  %834 = vmatmul.mubr.f32.gmra.mxu0 %v764
  %v835 = vpop.f32.mrf.mxu0
  %v836 = vadd.f32 %v762, %v835
  %v837 = vpop.f32.mrf.mxu0
  %838 = vmatprep.mubr.f32.mxu0 0.0
  %839 = vmatmul.mubr.f32.gmra.mxu0 %v767
  %v840 = vpop.f32.mrf.mxu0
  %v841 = vadd.f32 %v762, %v840
  %v842 = vpop.f32.mrf.mxu0
  %843 = vdwg.mxu0
  %v844 = vlaneseq
  %v845 = vshrl.u32 %v844, 7
  %v846 = vsub.s32 5, %v845
  %v847 = vrot.slane %v24, %v846
  %v848 = vmul.f32 %v836, %v847
  %v849 = vmul.f32 %v841, %v847
  %v850 = vlaneseq
  %v851 = vshrl.u32 %v850, 7
  %v852 = vsub.s32 6, %v851
  %v853 = vrot.slane %v24, %v852
  %v854 = vmul.f32 %v101, %v853
  %v855 = vmul.f32 %v106, %v853
  %v856 = vadd.f32 %v848, %v854
  %v857 = vadd.f32 %v849, %v855
  %v858 = vsel %vm109, %v856, 0.0
  %859 = vadd.xlane.f32.xlu0 %v858
  %v860 = vpop.xlane.xlu0 %859
  %v861 = vsel %vm109, %v857, 0.0
  %862 = vadd.xlane.f32.xlu0 %v861
  %v863 = vpop.xlane.xlu0 %862
  %v864 = vxor.u32 %v860, 2147483648
  %v865 = vxor.u32 %v863, 2147483648
  %v866 = vmul.f32 %v864, 1.442695
  %v867 = vpow.pop %v866
  %v868 = vmul.f32 %v865, 1.442695
  %v869 = vpow.pop %v868
  %v870 = vadd.f32 %v867, 1.0
  %v871 = vadd.f32 %v869, 1.0
  %v872 = vrcp.pop %v870
  %v873 = vmul.f32 1.0, %v872
  %v874 = vrcp.pop %v871
  %v875 = vmul.f32 1.0, %v874
  %v876 = vsub.f32 %v836, %v101
  %v877 = vsub.f32 %v841, %v106
  %v878 = vmul.f32 %v876, %v873
  %v879 = vmul.f32 %v877, %v875
  %v880 = vadd.f32 %v101, %v878
  %v881 = vadd.f32 %v106, %v879
  %v883 = vsel %vm109, %v880, 0
  %v886 = vsel %vm109, %v881, 0
  %888 = vmatprep.subr.mxu0 0.0
  %889 = vmatpush1.msra.mxu0 0.0
  %890 = vmatprep.subr.mxu0 0.0
  %891 = vmatpush1.msra.mxu0 0.0
  %892 = vmatprep.subr.mxu0 0.0
  %893 = vmatpush1.msra.mxu0 0.0
  %894 = vmatprep.subr.mxu0 0.0
  %895 = vmatpush1.msra.mxu0 0.0
  %896 = vmatprep.subr.mxu0 0.0
  %897 = vmatpush1.msra.mxu0 0.0
  %898 = vmatprep.subr.mxu0 0.0
  %899 = vmatpush1.msra.mxu0 0.0
  %900 = vmatprep.subr.mxu0 0.0
  %901 = vmatpush1.msra.mxu0 0.0
  %902 = vmatprep.subr.mxu0 0.0
  %903 = vmatpush1.msra.mxu0 0.0
  %904 = vmatprep.subr.mxu0 0.0
  %905 = vmatpush1.msra.mxu0 0.0
  %906 = vmatprep.subr.mxu0 0.0
  %907 = vmatpush1.msra.mxu0 0.0
  %908 = vmatprep.subr.mxu0 0.0
  %909 = vmatpush1.msra.mxu0 0.0
  %910 = vmatprep.subr.mxu0 0.0
  %911 = vmatpush1.msra.mxu0 0.0
  %912 = vmatprep.subr.mxu0 0.0
  %913 = vmatpush1.msra.mxu0 %v23
  %914 = vmatprep.subr.mxu0 0.0
  %915 = vmatpush1.msra.mxu0 %v22
  %916 = vmatprep.subr.mxu0 0.0
  %917 = vmatpush1.msra.mxu0 %v21
  %918 = vmatprep.subr.mxu0 0.0
  %919 = vmatpush1.msra.mxu0 %v20
  %920 = vmatprep.subr.mxu0 0.0
  %921 = vmatpush2.msra.mxu0 0.0
  %922 = vmatprep.subr.mxu0 0.0
  %923 = vmatpush2.msra.mxu0 0.0
  %924 = vmatprep.subr.mxu0 0.0
  %925 = vmatpush2.msra.mxu0 0.0
  %926 = vmatprep.subr.mxu0 0.0
  %927 = vmatpush2.msra.mxu0 0.0
  %928 = vmatprep.subr.mxu0 0.0
  %929 = vmatpush2.msra.mxu0 0.0
  %930 = vmatprep.subr.mxu0 0.0
  %931 = vmatpush2.msra.mxu0 0.0
  %932 = vmatprep.subr.mxu0 0.0
  %933 = vmatpush2.msra.mxu0 0.0
  %934 = vmatprep.subr.mxu0 0.0
  %935 = vmatpush2.msra.mxu0 0.0
  %936 = vmatprep.subr.mxu0 0.0
  %937 = vmatpush2.msra.mxu0 0.0
  %938 = vmatprep.subr.mxu0 0.0
  %939 = vmatpush2.msra.mxu0 0.0
  %940 = vmatprep.subr.mxu0 0.0
  %941 = vmatpush2.msra.mxu0 0.0
  %942 = vmatprep.subr.mxu0 0.0
  %943 = vmatpush2.msra.mxu0 0.0
  %944 = vmatprep.subr.mxu0 0.0
  %945 = vmatpush2.msra.mxu0 0.0
  %946 = vmatprep.subr.mxu0 0.0
  %947 = vmatpush2.msra.mxu0 0.0
  %948 = vmatprep.subr.mxu0 0.0
  %949 = vmatpush2.msra.mxu0 0.0
  %950 = vmatprep.subr.mxu0 0.0
  %951 = vmatpush2.msra.mxu0 0.0
  %952 = vmatprep.mubr.f32.mxu0 0.0
  %953 = vmatmul.mubr.f32.gmra.mxu0 %v883
  %v954 = vpop.f32.mrf.mxu0
  %v955 = vadd.f32 0.0, %v954
  %v956 = vpop.f32.mrf.mxu0
  %957 = vmatprep.mubr.f32.mxu0 0.0
  %958 = vmatmul.mubr.f32.gmra.mxu0 %v886
  %v959 = vpop.f32.mrf.mxu0
  %v960 = vadd.f32 0.0, %v959
  %v961 = vpop.f32.mrf.mxu0
  %962 = vdwg.mxu0
  %963 = vst [vmem:[%s2] sm:$0xff] %v955
  %964 = vst [vmem:[%s2 + $0x8] sm:$0xff] %v960
  // Predicated region
  $region10: #{gt_dynamics_forward.1} parent=0 // pred_check
    _
  $region11: #{gt_dynamics_forward.1} parent=0 // pred_check_branch
    %966 = sbr.rel (0) target = $region13
  $region12: #{gt_dynamics_forward.1} parent=0 // pred_region
    _
  $region13: #{gt_dynamics_forward.1} parent=0 // pred_fallthru
    _
  // Predicated region
  $region14: #{gt_dynamics_forward.1} parent=0 // pred_check
    _
  $region15: #{gt_dynamics_forward.1} parent=0 // pred_check_branch
    %968 = sbr.rel (0) target = $region17
  $region16: #{gt_dynamics_forward.1} parent=0 // pred_region
    _
  $region17: #{gt_dynamics_forward.1} parent=0 // pred_fallthru
    _

</llo_original>
